<compile_context>
chip_gen: v7x
topology: tpu7x:2x2x1
jax: 0.10.0
libtpu: 0.0.40
codegen_flags: <defaults>
</compile_context>

<pallas_src>
import functools
import math

import jax
import jax.numpy as jnp
from jax import lax
from jax.experimental import pallas as pl
from jax.experimental.pallas import tpu as pltpu

_LANES = 128
_SUM_BLOCK_ROWS = 4096     # 4096x128 f32 = 2 MiB per input tile (sum/mean path)
_ELEM_BLOCK_ROWS = 2048    # 2048x128 tiles for reduction='none' (2 in + 1 out)
_VMEM_LIMIT = 32 * 1024 * 1024   # explicit scoped-VMEM budget, safe on v5e/v6e/v7x


@functools.lru_cache(maxsize=1)
def _num_parts() -> int:
    """Parallel leading-axis width (~TensorCore count). Over-estimating is safe."""
    try:
        info = pltpu.get_tpu_info()
        for attr in ("num_cores", "core_count", "num_tensorcores", "tensorcore_count"):
            v = getattr(info, attr, None)
            if isinstance(v, int) and 1 <= v <= 4:
                return v
    except Exception:
        pass
    return 2   # safe default: extra parts become masked phantom steps


def _sublane_pack(*dtypes) -> int:
    """Packed-sublane multiple for the narrowest dtype (8 f32, 16 bf16, 32 int8)."""
    pack = 8
    for dt in dtypes:
        pack = max(pack, 32 // max(1, jnp.dtype(dt).itemsize))
    return pack


def _l1_sum_kernel(pred_ref, targ_ref, out_ref, *, block_rows, rows_valid, nblk):
    """Accumulate sum_rows(|p - t|) into a resident (8, 128) f32 output block."""
    c = pl.program_id(0)            # part (parallel -> one per TensorCore on v7x)
    j = pl.program_id(1)            # step (arbitrary: accumulation axis)
    steps = pl.num_programs(1)

    @pl.when(j == 0)
    def _():
        out_ref[...] = jnp.zeros_like(out_ref)

    linear = c * steps + j          # global block id (may be a phantom step)
    a = jnp.abs(pred_ref[...].astype(jnp.float32)
                - targ_ref[...].astype(jnp.float32))

    # Interior blocks: fully valid, plain reduce + accumulate (hot path).
    @pl.when(linear < nblk - 1)
    def _():
        out_ref[...] += a.reshape(block_rows // 8, 8, _LANES).sum(axis=0)

    # Last real block (possibly ragged) and phantom steps: mask invalid rows.
    # The mask is load-bearing here: OOB rows of a ragged block read
    # unspecified VMEM, and phantom steps would double-count the last block.
    @pl.when(linear >= nblk - 1)
    def _():
        row_ids = linear * block_rows + lax.broadcasted_iota(jnp.int32, a.shape, 0)
        masked = jnp.where(row_ids < rows_valid, a, jnp.float32(0.0))
        out_ref[...] += masked.reshape(block_rows // 8, 8, _LANES).sum(axis=0)


def _l1_elem_kernel(pred_ref, targ_ref, out_ref, *, loss_weight):
    """Elementwise loss_weight * |p - t| for reduction='none' (cast on store)."""
    d = pred_ref[...].astype(jnp.float32) - targ_ref[...].astype(jnp.float32)
    out_ref[...] = (jnp.abs(d) * jnp.float32(loss_weight)).astype(out_ref.dtype)


def _as_slab(flat, n_main, rows_main):
    """(rows_main, 128) view of the aligned prefix; pure reshape when aligned."""
    if n_main == flat.shape[0]:
        return flat.reshape(rows_main, _LANES)
    return lax.slice(flat, (0,), (n_main,)).reshape(rows_main, _LANES)


def l1_loss_tpu(pred, target, weight=None, *, loss_weight=1.0, reduction="mean"):
    """Pallas TPU implementation of basicsr L1Loss.forward (weight=None path)."""
    if reduction not in ("none", "mean", "sum"):
        raise ValueError(f"Unsupported reduction mode: {reduction}. "
                         f"Supported ones are: ['none', 'mean', 'sum']")
    if weight is not None:
        # TODO(synk): elementwise-weight path of basicsr's @weighted_loss not implemented.
        raise NotImplementedError("weight != None is not supported")

    orig_shape = pred.shape
    out_dtype = jnp.result_type(pred.dtype, target.dtype)
    p_flat = pred.reshape(-1)
    t_flat = target.reshape(-1)
    n = p_flat.shape[0]

    # dtype-aware alignment of the (rows, 128) slab.
    pack = _sublane_pack(pred.dtype, target.dtype)
    align = pack * _LANES
    n_main = (n // align) * align
    rows_main = n_main // _LANES
    lw = jnp.float32(loss_weight)

    if reduction == "none":
        if n_main == 0:
            out = jnp.abs(p_flat.astype(jnp.float32) - t_flat.astype(jnp.float32)) * lw
            return out.astype(out_dtype).reshape(orig_shape)

        p2 = _as_slab(p_flat, n_main, rows_main)
        t2 = _as_slab(t_flat, n_main, rows_main)
        block_rows = min(_ELEM_BLOCK_ROWS, rows_main)
        nblk = pl.cdiv(rows_main, block_rows)
        out2 = pl.pallas_call(
            functools.partial(_l1_elem_kernel, loss_weight=float(loss_weight)),
            out_shape=jax.ShapeDtypeStruct((rows_main, _LANES), out_dtype),
            grid_spec=pltpu.PrefetchScalarGridSpec(
                num_scalar_prefetch=0,
                grid=(nblk,),
                in_specs=[pl.BlockSpec((block_rows, _LANES), lambda i: (i, 0)),
                          pl.BlockSpec((block_rows, _LANES), lambda i: (i, 0))],
                out_specs=pl.BlockSpec((block_rows, _LANES), lambda i: (i, 0)),
            ),
            compiler_params=pltpu.CompilerParams(
                dimension_semantics=("parallel",),
                vmem_limit_bytes=_VMEM_LIMIT),
        )(p2, t2)
        main = out2.reshape(-1)
        if n_main == n:
            return main.reshape(orig_shape)
        tail = (jnp.abs(p_flat[n_main:].astype(jnp.float32)
                        - t_flat[n_main:].astype(jnp.float32)) * lw).astype(out_dtype)
        return jnp.concatenate([main, tail]).reshape(orig_shape)

    # 'mean' / 'sum'
    total = jnp.float32(0.0)
    if n_main:
        num_parts = _num_parts()
        p2 = _as_slab(p_flat, n_main, rows_main)
        t2 = _as_slab(t_flat, n_main, rows_main)
        block_rows = min(_SUM_BLOCK_ROWS, rows_main)
        nblk = pl.cdiv(rows_main, block_rows)
        steps = pl.cdiv(nblk, num_parts)

        def in_map(c, j):
            # Clamp phantom steps onto the last real block; the kernel masks them to 0.
            return (jnp.minimum(c * steps + j, nblk - 1), 0)

        partials = pl.pallas_call(
            functools.partial(_l1_sum_kernel, block_rows=block_rows,
                              rows_valid=rows_main, nblk=nblk),
            out_shape=jax.ShapeDtypeStruct((num_parts * 8, _LANES), jnp.float32),
            grid_spec=pltpu.PrefetchScalarGridSpec(
                num_scalar_prefetch=0,
                grid=(num_parts, steps),
                in_specs=[pl.BlockSpec((block_rows, _LANES), in_map),
                          pl.BlockSpec((block_rows, _LANES), in_map)],
                out_specs=pl.BlockSpec((8, _LANES), lambda c, j: (c, 0)),
            ),
            compiler_params=pltpu.CompilerParams(
                dimension_semantics=("parallel", "arbitrary"),
                vmem_limit_bytes=_VMEM_LIMIT),
        )(p2, t2)
        total = total + jnp.sum(partials)          # tiny XLA reduce (num_parts*8*128)

    if n_main < n:
        # <= align-1 trailing elements: trivial jnp tail, no full-tensor pad copy.
        tail_sum = jnp.sum(jnp.abs(p_flat[n_main:].astype(jnp.float32)
                                   - t_flat[n_main:].astype(jnp.float32)))
        total = total + tail_sum

    if reduction == "mean":
        total = total / jnp.float32(n)
    return (lw * total).astype(out_dtype)


class L1Loss:
    """JAX/Pallas equivalent of basicsr L1Loss (forward only)."""

    def __init__(self, loss_weight=1.0, reduction="mean"):
        if reduction not in ("none", "mean", "sum"):
            raise ValueError(f"Unsupported reduction mode: {reduction}. "
                             f"Supported ones are: ['none', 'mean', 'sum']")
        self.loss_weight = loss_weight
        self.reduction = reduction

    def __call__(self, pred, target, weight=None, **kwargs):
        return l1_loss_tpu(pred, target, weight,
                           loss_weight=self.loss_weight,
                           reduction=self.reduction)


if __name__ == "__main__":
    key = jax.random.PRNGKey(0)
    k1, k2, k3, k4 = jax.random.split(key, 4)

    # NCHW inputs, as in the PyTorch module.
    pred = jax.random.normal(k1, (2, 4, 16, 16), dtype=jnp.float32)
    target = jax.random.normal(k2, (2, 4, 16, 16), dtype=jnp.float32)

    # mean (default)
    out = jax.block_until_ready(L1Loss(loss_weight=1.0, reduction="mean")(pred, target))
    ref = jnp.mean(jnp.abs(pred - target))
    assert jnp.allclose(out, ref, rtol=1e-5, atol=1e-6), (out, ref)

    # sum with loss_weight
    out_s = jax.block_until_ready(L1Loss(loss_weight=0.5, reduction="sum")(pred, target))
    ref_s = 0.5 * jnp.sum(jnp.abs(pred - target))
    assert jnp.allclose(out_s, ref_s, rtol=1e-5, atol=1e-4), (out_s, ref_s)

    # none
    out_n = jax.block_until_ready(L1Loss(reduction="none")(pred, target))
    ref_n = jnp.abs(pred - target)
    assert out_n.shape == pred.shape and out_n.dtype == pred.dtype
    assert jnp.allclose(out_n, ref_n, rtol=1e-6, atol=1e-6)

    # Multi-block case exercising interior + ragged/masked blocks and the part split.
    pred_b = jax.random.normal(k3, (3, 4, 256, 256), dtype=jnp.float32)
    targ_b = jax.random.normal(k4, (3, 4, 256, 256), dtype=jnp.float32)
    out_b = jax.block_until_ready(L1Loss(reduction="mean")(pred_b, targ_b))
    ref_b = jnp.mean(jnp.abs(pred_b - targ_b))
    assert jnp.allclose(out_b, ref_b, rtol=1e-5, atol=1e-6), (out_b, ref_b)

    # Ragged element count exercising the aligned-prefix + jnp-tail path (sum).
    pred_c = jax.random.normal(k3, (2, 3, 17, 33), dtype=jnp.float32)
    targ_c = jax.random.normal(k4, (2, 3, 17, 33), dtype=jnp.float32)
    out_c = jax.block_until_ready(L1Loss(reduction="sum")(pred_c, targ_c))
    ref_c = jnp.sum(jnp.abs(pred_c - targ_c))
    assert jnp.allclose(out_c, ref_c, rtol=1e-5, atol=1e-4), (out_c, ref_c)

    # Ragged 'none' path (prefix kernel + tail concat).
    out_d = jax.block_until_ready(L1Loss(reduction="none")(pred_c, targ_c))
    ref_d = jnp.abs(pred_c - targ_c)
    assert out_d.shape == pred_c.shape
    assert jnp.allclose(out_d, ref_d, rtol=1e-6, atol=1e-6)

    print("KERNEL_OK")
</pallas_src>

<mosaic_0001>
module attributes {stable_mosaic.version = 11 : i64} {
  func.func @_l1_sum_kernel(%arg0: i32, %arg1: i32, %arg2: memref<16x128xf32, #tpu.memory_space<vmem>>, %arg3: memref<16x128xf32, #tpu.memory_space<vmem>>, %arg4: memref<8x128xf32, #tpu.memory_space<vmem>>) attributes {dimension_semantics = [#tpu.dimension_semantics<parallel>, #tpu.dimension_semantics<arbitrary>], iteration_bounds = array<i64: 2, 1>, scalar_prefetch = 0 : i64, scratch_operands = 0 : i64, tpu.core_type = #tpu.core_type<tc>, window_params = [{transform_indices = @transform_0, window_bounds = array<i64: 16, 128>}, {transform_indices = @transform_1, window_bounds = array<i64: 16, 128>}, {transform_indices = @transform_2, window_bounds = array<i64: 8, 128>}]} {
    %c0_i32 = arith.constant 0 : i32
    %0 = arith.cmpi eq, %arg1, %c0_i32 : i32
    %1 = arith.extui %0 : i1 to i32
    %c0_i32_0 = arith.constant 0 : i32
    %2 = arith.cmpi ne, %1, %c0_i32_0 : i32
    scf.if %2 {
      %cst = arith.constant 0.000000e+00 : f32
      %15 = vector.broadcast %cst : f32 to vector<8x128xf32>
      %c0_8 = arith.constant 0 : index
      %c0_9 = arith.constant 0 : index
      %16 = vector.load %arg4[%c0_8, %c0_9] : memref<8x128xf32, #tpu.memory_space<vmem>>, vector<8x128xf32>
      tpu.vector_store %arg4[%c0_8, %c0_9], %15 {strides = array<i32>} : memref<8x128xf32, #tpu.memory_space<vmem>>, vector<8x128xf32>,
    } else {
    }
    %c1_i32 = arith.constant 1 : i32
    %3 = arith.muli %arg0, %c1_i32 : i32
    %4 = arith.addi %3, %arg1 : i32
    %c0 = arith.constant 0 : index
    %c0_1 = arith.constant 0 : index
    %5 = vector.load %arg2[%c0, %c0_1] : memref<16x128xf32, #tpu.memory_space<vmem>>, vector<16x128xf32>
    %c0_2 = arith.constant 0 : index
    %c0_3 = arith.constant 0 : index
    %6 = vector.load %arg3[%c0_2, %c0_3] : memref<16x128xf32, #tpu.memory_space<vmem>>, vector<16x128xf32>
    %7 = arith.subf %5, %6 : vector<16x128xf32>
    %8 = math.absf %7 : vector<16x128xf32>
    %c0_i32_4 = arith.constant 0 : i32
    %9 = arith.cmpi slt, %4, %c0_i32_4 : i32
    %10 = arith.extui %9 : i1 to i32
    %c0_i32_5 = arith.constant 0 : i32
    %11 = arith.cmpi ne, %10, %c0_i32_5 : i32
    scf.if %11 {
      %c0_8 = arith.constant 0 : index
      %c0_9 = arith.constant 0 : index
      %15 = vector.load %arg4[%c0_8, %c0_9] : memref<8x128xf32, #tpu.memory_space<vmem>>, vector<8x128xf32>
      %16 = vector.shape_cast %8 : vector<16x128xf32> to vector<2x8x128xf32>
      %cst = arith.constant dense<0.000000e+00> : vector<8x128xf32>
      %17 = vector.multi_reduction <add>, %16, %cst [0] : vector<2x8x128xf32> to vector<8x128xf32>
      %18 = arith.addf %15, %17 : vector<8x128xf32>
      %c0_10 = arith.constant 0 : index
      %c0_11 = arith.constant 0 : index
      %19 = vector.load %arg4[%c0_10, %c0_11] : memref<8x128xf32, #tpu.memory_space<vmem>>, vector<8x128xf32>
      tpu.vector_store %arg4[%c0_10, %c0_11], %18 {strides = array<i32>} : memref<8x128xf32, #tpu.memory_space<vmem>>, vector<8x128xf32>,
    } else {
    }
    %c0_i32_6 = arith.constant 0 : i32
    %12 = arith.cmpi sge, %4, %c0_i32_6 : i32
    %13 = arith.extui %12 : i1 to i32
    %c0_i32_7 = arith.constant 0 : i32
    %14 = arith.cmpi ne, %13, %c0_i32_7 : i32
    scf.if %14 {
      %c16_i32 = arith.constant 16 : i32
      %15 = arith.muli %4, %c16_i32 : i32
      %16 = tpu.iota {dimensions = array<i32: 0>} : vector<16x128xi32>
      %17 = vector.broadcast %15 : i32 to vector<16x128xi32>
      %18 = arith.addi %17, %16 : vector<16x128xi32>
      %c16_i32_8 = arith.constant 16 : i32
      %19 = vector.broadcast %c16_i32_8 : i32 to vector<16x128xi32>
      %20 = arith.cmpi slt, %18, %19 : vector<16x128xi32>
      %cst = arith.constant 0.000000e+00 : f32
      %21 = vector.broadcast %cst : f32 to vector<16x128xf32>
      %22 = arith.select %20, %8, %21 : vector<16x128xi1>, vector<16x128xf32>
      %c0_9 = arith.constant 0 : index
      %c0_10 = arith.constant 0 : index
      %23 = vector.load %arg4[%c0_9, %c0_10] : memref<8x128xf32, #tpu.memory_space<vmem>>, vector<8x128xf32>
      %24 = vector.shape_cast %22 : vector<16x128xf32> to vector<2x8x128xf32>
      %cst_11 = arith.constant dense<0.000000e+00> : vector<8x128xf32>
      %25 = vector.multi_reduction <add>, %24, %cst_11 [0] : vector<2x8x128xf32> to vector<8x128xf32>
      %26 = arith.addf %23, %25 : vector<8x128xf32>
      %c0_12 = arith.constant 0 : index
      %c0_13 = arith.constant 0 : index
      %27 = vector.load %arg4[%c0_12, %c0_13] : memref<8x128xf32, #tpu.memory_space<vmem>>, vector<8x128xf32>
      tpu.vector_store %arg4[%c0_12, %c0_13], %26 {strides = array<i32>} : memref<8x128xf32, #tpu.memory_space<vmem>>, vector<8x128xf32>,
    } else {
    }
    return
  }
  func.func @transform_0(%arg0: i32, %arg1: i32) -> (i32, i32) {
    %c1_i32 = arith.constant 1 : i32
    %0 = arith.muli %arg0, %c1_i32 : i32
    %1 = arith.addi %0, %arg1 : i32
    %c0_i32 = arith.constant 0 : i32
    %2 = arith.minsi %1, %c0_i32 : i32
    %c0_i32_0 = arith.constant 0 : i32
    %c0_i32_1 = arith.constant 0 : i32
    return %2, %c0_i32_0 : i32, i32
  }
  func.func @transform_1(%arg0: i32, %arg1: i32) -> (i32, i32) {
    %c1_i32 = arith.constant 1 : i32
    %0 = arith.muli %arg0, %c1_i32 : i32
    %1 = arith.addi %0, %arg1 : i32
    %c0_i32 = arith.constant 0 : i32
    %2 = arith.minsi %1, %c0_i32 : i32
    %c0_i32_0 = arith.constant 0 : i32
    %c0_i32_1 = arith.constant 0 : i32
    return %2, %c0_i32_0 : i32, i32
  }
  func.func @transform_2(%arg0: i32, %arg1: i32) -> (i32, i32) {
    %c0_i32 = arith.constant 0 : i32
    %c0_i32_0 = arith.constant 0 : i32
    return %arg0, %c0_i32 : i32, i32
  }
}

</mosaic_0001>

<llo_original>
// kernel: tpu_custom_call.1
$region0: #{tpu_custom_call.1}
  #allocation0 [shape = 'u32[]', space=smem, size = 0x4, offset = 0x4, fixed_abs, tag = 'smem constant byte address 0x4 - core index']
  #allocation1 [shape = 'u32[144,128]{1,0:T(1,128)}', space=vmem, size = 0x12000, scoped, tag = 'internal scratch']
  %s0 = inlined_call_operand.hbm [shape: f32[16,128], index: 0, kind: input, shape index: {}]
  %s1 = inlined_call_operand.hbm [shape: f32[16,128], index: 1, kind: input, shape index: {}]
  %s2 = inlined_call_operand.hbm [shape: f32[16,128], index: 2, kind: output, shape index: {}]
  %s3 = sld [smem:[#allocation0]]
  $region61: #{tpu_custom_call.1} parent=0
    _
  %s5 = ssub.s32 1, %s3
  %s6 = scalar_select 0, %s5, %s3
  $region1: #{tpu_custom_call.1} parent=0
    #allocation2 [shape = 'u8[16384]{0}', space=vmem, size = 0x4000, scoped, tag = 'input window, operand 0']
    #allocation3 [shape = 's32[2]{0}', space=sflag, size = 0x8, scoped, tag = 'scoped memory for tpu_custom_call.1']
    #allocation4 [shape = 's32[2]{0}', space=sflag, size = 0x8, scoped, tag = 'scoped memory for tpu_custom_call.1']
    #allocation5 [shape = 'u8[16384]{0}', space=vmem, size = 0x4000, scoped, tag = 'input window, operand 1']
    #allocation6 [shape = 's32[2]{0}', space=sflag, size = 0x8, scoped, tag = 'scoped memory for tpu_custom_call.1']
    #allocation7 [shape = 'u8[8192]{0}', space=vmem, size = 0x2000, scoped, tag = 'output window, operand 0']
    %7 = vsyncpa [#allocation3], 0
    %s8 = scalar_lea.sflag [#allocation3], 1
    %9 = vsyncpa %s8, 0
    %10 = vsyncpa [#allocation6], 0
    %s11 = scalar_lea.sflag [#allocation6], 1
    %12 = vsyncpa %s11, 0
    %13 = vsyncpa [#allocation4], 0
    %s14 = scalar_lea.sflag [#allocation4], 1
    %15 = vsyncpa %s14, 0
    loop: start=0, step=1, limit=4
    $region2: #{tpu_custom_call.1} parent=1 // loop_pre_header
      _
    $region3: #{tpu_custom_call.1} parent=1 // loop_header
      %s17 = sphi 0, %s21
      %p18 = scmp.ge.s32.totalorder %s17, 4
      %s24 = sphi 0, %s36
      %s25 = sphi 0, %s32
      %s26 = sphi 0, %s24
      %s27 = sphi 0, %s25
      %s28 = sphi 0, %s26
      %s29 = sphi 0, %s27
      %s45 = sphi 0, %s47
      %s48 = sphi 0, %s45
      %s49 = sphi 0, %s48
      %s65 = sphi 0, %s49
      %s77 = sphi 0, %s79
      %s80 = sphi 0, %s77
      %s81 = sphi 0, %s80
      %s97 = sphi 0, %s81
      %s103 = sphi 0, %s105
      %s106 = sphi 0, %s103
      %s107 = sphi 0, %s106
      %s123 = sphi 0, %s107
    $region4: #{tpu_custom_call.1} parent=1 // loop_header_branch
      %20 = sbr.rel (%p18) target = $region8
    $region5: #{tpu_custom_call.1} parent=1 // loop_body
      %s22 = ssub.s32 %s17, 1
      %s23 = ssub.s32 %s17, 2
      %s30 = sadd.s32 1, %s25
      %p31 = scmp.ge.s32.totalorder %s30, 1
      %s32 = scalar_select %p31, 0, %s30
      %s33 = sadd.s32 1, %s24
      %s34 = scalar_select %p31, %s33, %s24
      %p35 = scmp.ge.s32.totalorder %s34, 2
      %s36 = scalar_select %p35, 0, %s34
      %s37 = sadd.s32 %s24, %s25
      %p38 = scmp.lt.s32.totalorder %s37, 0
      %s39 = scalar_select %p38, %s37, 0
      %s40 = sadd.s32 %s36, %s32
      %p41 = scmp.lt.s32.totalorder %s40, 0
      %s42 = scalar_select %p41, %s40, 0
      %s43 = ssub.s32 %s39, %s42
      %p44 = scmp.eq.s32.totalorder %s43, 0
      %s46 = sadd.s32 %s45, 1
      %s47 = scalar_select %p44, %s45, %s46
      %p50 = pneg %p44
      %p51 = scmp.eq.s32.totalorder %s17, 1
      %p52 = por %p50, %p51
      %p53 = scmp.ne.s32.totalorder %s45, %s48
      %p54 = scmp.eq.s32.totalorder %s17, 0
      %p55 = por %p53, %p54
      %p56 = scmp.ne.s32.totalorder %s45, %s48
      %p57 = scmp.eq.s32.totalorder %s22, 1
      %p58 = por %p56, %p57
      %p59 = scmp.ne.s32.totalorder %s48, %s49
      %p60 = scmp.eq.s32.totalorder %s22, 0
      %p61 = por %p59, %p60
      %p62 = scmp.ne.s32.totalorder %s48, %s49
      %p63 = scmp.eq.s32.totalorder %s23, 1
      %p64 = por %p62, %p63
      %p66 = scmp.ne.s32.totalorder %s49, %s65
      %p67 = scmp.eq.s32.totalorder %s23, 0
      %p68 = por %p66, %p67
      %s69 = sadd.s32 %s24, %s25
      %p70 = scmp.lt.s32.totalorder %s69, 0
      %s71 = scalar_select %p70, %s69, 0
      %s72 = sadd.s32 %s36, %s32
      %p73 = scmp.lt.s32.totalorder %s72, 0
      %s74 = scalar_select %p73, %s72, 0
      %s75 = ssub.s32 %s71, %s74
      %p76 = scmp.eq.s32.totalorder %s75, 0
      %s78 = sadd.s32 %s77, 1
      %s79 = scalar_select %p76, %s77, %s78
      %p82 = pneg %p76
      %p83 = scmp.eq.s32.totalorder %s17, 1
      %p84 = por %p82, %p83
      %p85 = scmp.ne.s32.totalorder %s77, %s80
      %p86 = scmp.eq.s32.totalorder %s17, 0
      %p87 = por %p85, %p86
      %p88 = scmp.ne.s32.totalorder %s77, %s80
      %p89 = scmp.eq.s32.totalorder %s22, 1
      %p90 = por %p88, %p89
      %p91 = scmp.ne.s32.totalorder %s80, %s81
      %p92 = scmp.eq.s32.totalorder %s22, 0
      %p93 = por %p91, %p92
      %p94 = scmp.ne.s32.totalorder %s80, %s81
      %p95 = scmp.eq.s32.totalorder %s23, 1
      %p96 = por %p94, %p95
      %p98 = scmp.ne.s32.totalorder %s81, %s97
      %p99 = scmp.eq.s32.totalorder %s23, 0
      %p100 = por %p98, %p99
      %s101 = ssub.s32 %s24, %s36
      %p102 = scmp.eq.s32.totalorder %s101, 0
      %s104 = sadd.s32 %s103, 1
      %s105 = scalar_select %p102, %s103, %s104
      %p108 = pneg %p102
      %p109 = scmp.eq.s32.totalorder %s17, 1
      %p110 = por %p108, %p109
      %p111 = scmp.ne.s32.totalorder %s103, %s106
      %p112 = scmp.eq.s32.totalorder %s17, 0
      %p113 = por %p111, %p112
      %p114 = scmp.ne.s32.totalorder %s103, %s106
      %p115 = scmp.eq.s32.totalorder %s22, 1
      %p116 = por %p114, %p115
      %p117 = scmp.ne.s32.totalorder %s106, %s107
      %p118 = scmp.eq.s32.totalorder %s22, 0
      %p119 = por %p117, %p118
      %p120 = scmp.ne.s32.totalorder %s106, %s107
      %p121 = scmp.eq.s32.totalorder %s23, 1
      %p122 = por %p120, %p121
      %p124 = scmp.ne.s32.totalorder %s107, %s123
      %p125 = scmp.eq.s32.totalorder %s23, 0
      %p126 = por %p124, %p125
      %p127 = scmp.le.s32.totalorder 1, %s17
      %p128 = scmp.lt.s32.totalorder %s17, 3
      %p129 = pnand %p127, %p128
      %p130 = pneg %p129
      // Predicated region
      $region9: #{tpu_custom_call.1} parent=5 // pred_check
        _
      $region10: #{tpu_custom_call.1} parent=5 // pred_check_branch
        %132 = sbr.rel (%p129) target = $region12
      $region11: #{tpu_custom_call.1} parent=5 // pred_region
        %s133 = ssub.s32 %s17, 1
      $region12: #{tpu_custom_call.1} parent=5 // pred_fallthru
        _
      %p134 = scmp.lt.s32.totalorder %s17, 2
      // Predicated region
      $region13: #{tpu_custom_call.1} parent=5 // pred_check
        %p135 = pneg %p134
      $region14: #{tpu_custom_call.1} parent=5 // pred_check_branch
        %137 = sbr.rel (%p135) target = $region16
      $region15: #{tpu_custom_call.1} parent=5 // pred_region
        // Predicated region
        $region17: #{tpu_custom_call.1} parent=15 // pred_check
          %p138 = pneg %p55
        $region18: #{tpu_custom_call.1} parent=15 // pred_check_branch
          %140 = sbr.rel (%p138) target = $region20
        $region19: #{tpu_custom_call.1} parent=15 // pred_region
          %s141 = sand.u32 %s45, 1
          %s142 = scalar_lea.sflag [#allocation3], %s141
          %s143 = sand.u32 %s45, 1
          %s144 = smul.addr %s143, 16
          %s145 = scalar_lea.vmem [#allocation2], %s144
          %s146 = sadd.s32 %s24, %s25
          %p147 = scmp.lt.s32.totalorder %s146, 0
          %s148 = scalar_select %p147, %s146, 0
          %s149 = smul.u32 2, %s148
          %s151 = ssub.s32 256, 256
          %152 = vsyncadd %s142, %s151
          %s153 = smul.addr %s149, 128
          %s154 = scalar_lea.hbm %s0, %s153
          %s155 = sshll.u32 %s145, 4
          %s156 = int_to_ptr.vmem [resolvable:$true] %s155
          %161 = dma.hbm_to_vmem [thread:$0]  %s154, 256, %s156, %s142, 128, 128, 8
        $region20: #{tpu_custom_call.1} parent=15 // pred_fallthru
          _
        // Predicated region
        $region21: #{tpu_custom_call.1} parent=15 // pred_check
          %p162 = pneg %p87
        $region22: #{tpu_custom_call.1} parent=15 // pred_check_branch
          %164 = sbr.rel (%p162) target = $region24
        $region23: #{tpu_custom_call.1} parent=15 // pred_region
          %s165 = sand.u32 %s77, 1
          %s166 = scalar_lea.sflag [#allocation6], %s165
          %s167 = sand.u32 %s77, 1
          %s168 = smul.addr %s167, 16
          %s169 = scalar_lea.vmem [#allocation5], %s168
          %s170 = sadd.s32 %s24, %s25
          %p171 = scmp.lt.s32.totalorder %s170, 0
          %s172 = scalar_select %p171, %s170, 0
          %s173 = smul.u32 2, %s172
          %s175 = ssub.s32 256, 256
          %176 = vsyncadd %s166, %s175
          %s177 = smul.addr %s173, 128
          %s178 = scalar_lea.hbm %s1, %s177
          %s179 = sshll.u32 %s169, 4
          %s180 = int_to_ptr.vmem [resolvable:$true] %s179
          %185 = dma.hbm_to_vmem [thread:$0]  %s178, 256, %s180, %s166, 128, 128, 8
        $region24: #{tpu_custom_call.1} parent=15 // pred_fallthru
          _
      $region16: #{tpu_custom_call.1} parent=5 // pred_fallthru
        _
      %p186 = scmp.le.s32.totalorder 1, %s17
      %p187 = scmp.lt.s32.totalorder %s17, 3
      %p188 = pnand %p186, %p187
      %p189 = pneg %p188
      // Predicated region
      $region25: #{tpu_custom_call.1} parent=5 // pred_check
        _
      $region26: #{tpu_custom_call.1} parent=5 // pred_check_branch
        %191 = sbr.rel (%p188) target = $region28
      $region27: #{tpu_custom_call.1} parent=5 // pred_region
        %s192 = ssub.s32 %s17, 1
        %s193 = sand.u32 %s48, 1
        %s194 = scalar_lea.sflag [#allocation3], %s193
        %s195 = sand.u32 %s48, 1
        %s196 = smul.addr %s195, 16
        %s197 = scalar_lea.vmem [#allocation2], %s196
        // Predicated region
        $region29: #{tpu_custom_call.1} parent=27 // pred_check
          %p198 = pneg %p61
        $region30: #{tpu_custom_call.1} parent=27 // pred_check_branch
          %200 = sbr.rel (%p198) target = $region32
        $region31: #{tpu_custom_call.1} parent=27 // pred_region
          %201 = dma.done %s194, 256
        $region32: #{tpu_custom_call.1} parent=27 // pred_fallthru
          _
        %s202 = sand.u32 %s80, 1
        %s203 = scalar_lea.sflag [#allocation6], %s202
        %s204 = sand.u32 %s80, 1
        %s205 = smul.addr %s204, 16
        %s206 = scalar_lea.vmem [#allocation5], %s205
        // Predicated region
        $region33: #{tpu_custom_call.1} parent=27 // pred_check
          %p207 = pneg %p93
        $region34: #{tpu_custom_call.1} parent=27 // pred_check_branch
          %209 = sbr.rel (%p207) target = $region36
        $region35: #{tpu_custom_call.1} parent=27 // pred_region
          %210 = dma.done %s203, 256
        $region36: #{tpu_custom_call.1} parent=27 // pred_fallthru
          _
        %s211 = sand.u32 %s48, 1
        %s212 = scalar_lea.sflag [#allocation3], %s211
        %s213 = sand.u32 %s48, 1
        %s214 = smul.addr %s213, 16
        %s215 = scalar_lea.vmem [#allocation2], %s214
        %p216 = pneg %p61
        %p217 = pneg %p58
        %s218 = sand.u32 %s80, 1
        %s219 = scalar_lea.sflag [#allocation6], %s218
        %s220 = sand.u32 %s80, 1
        %s221 = smul.addr %s220, 16
        %s222 = scalar_lea.vmem [#allocation5], %s221
        %p223 = pneg %p93
        %p224 = pneg %p90
        %p225 = pneg %p119
        %p226 = pneg %p116
        %s227 = sand.u32 %s106, 1
        %s228 = scalar_lea.sflag [#allocation4], %s227
        %s229 = sand.u32 %s106, 1
        %s230 = smul.addr %s229, 8
        %s231 = scalar_lea.vmem [#allocation7], %s230
        %s232 = sadd.s32 %s26, %s27
        %p233 = scmp.lt.s32.totalorder %s232, 0
        %s234 = scalar_select %p233, %s232, 0
        %s235 = smul.u32 2, %s234
        %s236 = sadd.s32 %s26, %s27
        %p237 = scmp.lt.s32.totalorder %s236, 0
        %s238 = scalar_select %p237, %s236, 0
        %s239 = smul.u32 2, %s238
        %p240 = scmp.eq.s32.totalorder %s27, 0
        // Predicated region
        $region37: #{tpu_custom_call.1} parent=27 // pred_check
          %p241 = pneg %p240
        $region38: #{tpu_custom_call.1} parent=27 // pred_check_branch
          %243 = sbr.rel (%p241) target = $region40
        $region39: #{tpu_custom_call.1} parent=27 // pred_region
          %244 = vst [vmem:[%s231] sm:$0xff] 0.0
        $region40: #{tpu_custom_call.1} parent=27 // pred_fallthru
          _
        %s245 = sadd.s32 %s26, %s27
        %v246 = vld [vmem:[%s197] sm:$0xff]
        %v247 = vld [vmem:[%s197 + $0x8] sm:$0xff]
        %v248 = vld [vmem:[%s206] sm:$0xff]
        %v249 = vld [vmem:[%s206 + $0x8] sm:$0xff]
        %v250 = vsub.f32 %v246, %v248
        %v251 = vsub.f32 %v247, %v249
        %v252 = vand.u32 2147483647, %v250
        %v253 = vand.u32 2147483647, %v251
        %p254 = scmp.lt.s32.totalorder %s245, 0
        // Predicated region
        $region41: #{tpu_custom_call.1} parent=27 // pred_check
          %p255 = pneg %p254
        $region42: #{tpu_custom_call.1} parent=27 // pred_check_branch
          %257 = sbr.rel (%p255) target = $region44
        $region43: #{tpu_custom_call.1} parent=27 // pred_region
          %v258 = vld [vmem:[%s231] sm:$0xff]
          %v259 = vadd.f32 %v252, %v253
          %v260 = vadd.f32 %v258, %v259
          %261 = vst [vmem:[%s231] sm:$0xff] %v260
        $region44: #{tpu_custom_call.1} parent=27 // pred_fallthru
          _
        %p262 = scmp.ge.s32.totalorder %s245, 0
        // Predicated region
        $region45: #{tpu_custom_call.1} parent=27 // pred_check
          %p263 = pneg %p262
        $region46: #{tpu_custom_call.1} parent=27 // pred_check_branch
          %265 = sbr.rel (%p263) target = $region48
        $region47: #{tpu_custom_call.1} parent=27 // pred_region
          %s266 = smul.u32 %s245, 16
          %v267 = vlaneseq
          %v268 = vshrl.u32 %v267, 7
          %v269 = vadd.s32 %v268, 8
          %v270 = vstv %s266
          %v271 = vadd.s32 %v270, %v268
          %v272 = vadd.s32 %v270, %v269
          %vm273 = vcmp.lt.s32.totalorder %v271, 16
          %vm274 = vcmp.lt.s32.totalorder %v272, 16
          %v275 = vsel %vm273, %v252, 0.0
          %v276 = vsel %vm274, %v253, 0.0
          %v277 = vld [vmem:[%s231] sm:$0xff]
          %v278 = vadd.f32 %v275, %v276
          %v279 = vadd.f32 %v277, %v278
          %280 = vst [vmem:[%s231] sm:$0xff] %v279
        $region48: #{tpu_custom_call.1} parent=27 // pred_fallthru
          _
        %s281 = sand.u32 %s106, 1
        %s282 = scalar_lea.sflag [#allocation4], %s281
        %s283 = sand.u32 %s106, 1
        %s284 = smul.addr %s283, 8
        %s285 = scalar_lea.vmem [#allocation7], %s284
        // Predicated region
        $region49: #{tpu_custom_call.1} parent=27 // pred_check
          %p286 = pneg %p116
        $region50: #{tpu_custom_call.1} parent=27 // pred_check_branch
          %288 = sbr.rel (%p286) target = $region52
        $region51: #{tpu_custom_call.1} parent=27 // pred_region
          %s290 = ssub.s32 128, 128
          %291 = vsyncadd %s282, %s290
          %s292 = smul.addr %s26, 128
          %s293 = scalar_lea.hbm %s2, %s292
          %s295 = sshll.u32 %s285, 4
          %s296 = int_to_ptr.vmem [resolvable:$true] %s295
          %298 = dma.vmem_to_hbm [thread:$0]  %s296, 128, %s293, %s282
        $region52: #{tpu_custom_call.1} parent=27 // pred_fallthru
          _
      $region28: #{tpu_custom_call.1} parent=5 // pred_fallthru
        _
      %p299 = scmp.le.s32.totalorder 2, %s17
      // Predicated region
      $region53: #{tpu_custom_call.1} parent=5 // pred_check
        %p300 = pneg %p299
      $region54: #{tpu_custom_call.1} parent=5 // pred_check_branch
        %302 = sbr.rel (%p300) target = $region56
      $region55: #{tpu_custom_call.1} parent=5 // pred_region
        %s303 = ssub.s32 %s17, 2
        // Predicated region
        $region57: #{tpu_custom_call.1} parent=55 // pred_check
          %p304 = pneg %p122
        $region58: #{tpu_custom_call.1} parent=55 // pred_check_branch
          %306 = sbr.rel (%p304) target = $region60
        $region59: #{tpu_custom_call.1} parent=55 // pred_region
          %s307 = sand.u32 %s107, 1
          %s308 = scalar_lea.sflag [#allocation4], %s307
          %s309 = sand.u32 %s107, 1
          %s310 = smul.addr %s309, 8
          %s311 = scalar_lea.vmem [#allocation7], %s310
          %312 = dma.done %s308, 128
        $region60: #{tpu_custom_call.1} parent=55 // pred_fallthru
          _
      $region56: #{tpu_custom_call.1} parent=5 // pred_fallthru
        _
    $region6: #{tpu_custom_call.1} parent=1 // loop_footer
      %s21 = sadd.s32 1, %s17
    $region7: #{tpu_custom_call.1} parent=1 // loop_footer_branch
      %16 = sbr.rel target = $region3
    $region8: #{tpu_custom_call.1} parent=1 // loop_exit
      _
    %313 = vsyncpa [#allocation3], 1
    %s314 = scalar_lea.sflag [#allocation3], 1
    %315 = vsyncpa %s314, 1
    %316 = vsyncpa [#allocation6], 1
    %s317 = scalar_lea.sflag [#allocation6], 1
    %318 = vsyncpa %s317, 1
    %319 = vsyncpa [#allocation4], 1
    %s320 = scalar_lea.sflag [#allocation4], 1
    %321 = vsyncpa %s320, 1

</llo_original>
